<compile_context>
chip_gen: v7x
topology: tpu7x:2x2x1
jax: 0.10.0
libtpu: 0.0.40
codegen_flags: <defaults>
</compile_context>

<pallas_src>
import math
from functools import partial

import jax
import jax.numpy as jnp
from jax.experimental import pallas as pl
from jax.experimental.pallas import tpu as pltpu


def _xtx_linear_kernel(scales_ref, x_ref, wt_ref, b_ref, xtx_prev_ref,
                       y_ref, xtx_ref):
    """scales = [n/(n+tmp), 2/(n+tmp)] in SMEM; grid axis 0 = row tiles of x."""
    k = pl.program_id(0)

    x = x_ref[...]

    # ---- wrapped nn.Linear forward: y = x @ W^T + b (once per row tile) ----
    y = jnp.dot(x, wt_ref[...], preferred_element_type=jnp.float32)
    y_ref[...] = (y + b_ref[...]).astype(y_ref.dtype)

    # ---- AQEngine.add_batch: accumulate raw X^T X across the grid ----------
    @pl.when(k == 0)
    def _init():
        xtx_ref[...] = jnp.zeros_like(xtx_ref)

    xtx_ref[...] += jax.lax.dot_general(
        x, x, (((0,), (0,)), ((), ())), preferred_element_type=jnp.float32)

    # ---- finalize: XTX = scale_old * XTX_prev + (2/n_new) * sum_k x^T x ----
    @pl.when(k == pl.num_programs(0) - 1)
    def _finalize():
        xtx_ref[...] = (scales_ref[0] * xtx_prev_ref[...]
                        + scales_ref[1] * xtx_ref[...])


def _round_up(v, m):
    return (v + m - 1) // m * m


@partial(jax.jit, static_argnums=(5,), donate_argnums=(3,))
def _fused_forward(x_flat, w_t, bias_row, xtx_prev, scales, row_block):
    n, h = x_flat.shape
    o = w_t.shape[1]

    # Row-tile size: multiple of 8 sublanes; pad N with zero rows (zeros add
    # nothing to X^T X and the padded y rows are sliced off afterwards).
    tm = min(row_block, _round_up(n, 8))
    n_pad = _round_up(n, tm)
    if n_pad != n:
        x_flat = jnp.pad(x_flat, ((0, n_pad - n), (0, 0)))
    grid = (n_pad // tm,)

    smem = pl.BlockSpec(memory_space=pltpu.MemorySpace.SMEM)

    y_pad, xtx_new = pl.pallas_call(
        _xtx_linear_kernel,
        out_shape=(jax.ShapeDtypeStruct((n_pad, o), x_flat.dtype),
                   jax.ShapeDtypeStruct((h, h), jnp.float32)),
        grid_spec=pltpu.PrefetchScalarGridSpec(
            num_scalar_prefetch=0,
            grid=grid,
            in_specs=[
                smem,                                        # scales (2,)
                pl.BlockSpec((tm, h), lambda k: (k, 0)),     # x row tile
                pl.BlockSpec((h, o), lambda k: (0, 0)),      # W^T, resident
                pl.BlockSpec((1, o), lambda k: (0, 0)),      # f32 bias row
                pl.BlockSpec((h, h), lambda k: (0, 0)),      # previous XTX
            ],
            out_specs=(
                pl.BlockSpec((tm, o), lambda k: (k, 0)),     # y row tile
                pl.BlockSpec((h, h), lambda k: (0, 0)),      # XTX accumulator
            ),
        ),
        # Reuse the previous-XTX HBM buffer for the new XTX (accumulate in
        # place -- avoids a second H*H f32 allocation + writeback per call).
        input_output_aliases={4: 1},
        compiler_params=pltpu.CompilerParams(
            dimension_semantics=("arbitrary",),  # reduction axis for XTX
            vmem_limit_bytes=48 * 1024 * 1024,   # headroom under v7x's 64 MiB
        ),
    )(scales, x_flat, w_t, bias_row, xtx_prev)

    return y_pad[:n], xtx_new


class LayerWrapperThatAccumulatesXTX:
    """JAX/Pallas port of `_LayerWrapperThatAccumulatesXTX` wrapping nn.Linear."""

    def __init__(self, weight, bias, row_block=512):
        self.weight = weight                                    # (O, H) torch
        self.w_t = jnp.transpose(weight)                        # (H, O) once
        self.bias_row = bias.reshape(1, -1).astype(jnp.float32)  # (1, O) f32
        self.out_features = weight.shape[0]
        h = weight.shape[1]
        self.XTX = jnp.zeros((h, h), jnp.float32)
        self.nsamples = 0
        self.row_block = row_block

    def forward(self, x):
        # x: (B, S, H); tmp = batch dim, exactly as AQEngine.add_batch does.
        tmp = x.shape[0]
        new_n = self.nsamples + tmp
        scales = jnp.array([self.nsamples / new_n, 2.0 / new_n], jnp.float32)
        x_flat = x.reshape(-1, x.shape[-1])
        y_flat, xtx_new = _fused_forward(
            x_flat, self.w_t, self.bias_row, self.XTX, scales, self.row_block)
        self.XTX = xtx_new
        self.nsamples = new_n
        return y_flat.reshape(x.shape[:-1] + (self.out_features,))


def _reference(x, w, b, xtx_prev, nsamples):
    tmp = x.shape[0]
    new_n = nsamples + tmp
    xf = x.reshape(-1, x.shape[-1]).astype(jnp.float32) * math.sqrt(2.0 / new_n)
    xtx = xtx_prev * (nsamples / new_n) + xf.T @ xf
    y = x @ w.T + b
    return y, xtx, new_n


if __name__ == "__main__":
    B, S, H, O = 2, 8, 32, 32

    key = jax.random.PRNGKey(0)
    kx1, kx2, kw, kb = jax.random.split(key, 4)
    x1 = jax.random.normal(kx1, (B, S, H), jnp.float32)
    x2 = jax.random.normal(kx2, (B, S, H), jnp.float32)
    weight = jax.random.normal(kw, (O, H), jnp.float32) * (1.0 / math.sqrt(H))
    bias = jax.random.normal(kb, (O,), jnp.float32) * 0.1

    # row_block=8 so the demo (N = B*S = 16) exercises a 2-step reduction grid.
    mod = LayerWrapperThatAccumulatesXTX(weight, bias, row_block=8)

    # Run twice to exercise the running-statistics accumulation + aliasing.
    y1 = mod.forward(x1)
    y2 = mod.forward(x2)
    jax.block_until_ready((y1, y2, mod.XTX))

    # Pure-JAX reference check.
    xtx_ref = jnp.zeros((H, H), jnp.float32)
    ns = 0
    y1_ref, xtx_ref, ns = _reference(x1, weight, bias, xtx_ref, ns)
    y2_ref, xtx_ref, ns = _reference(x2, weight, bias, xtx_ref, ns)

    assert ns == mod.nsamples
    assert jnp.allclose(y1, y1_ref, rtol=1e-5, atol=1e-4)
    assert jnp.allclose(y2, y2_ref, rtol=1e-5, atol=1e-4)
    assert jnp.allclose(mod.XTX, xtx_ref, rtol=1e-5, atol=1e-4)

    print("KERNEL_OK")
</pallas_src>

<mosaic_0001>
module attributes {stable_mosaic.version = 11 : i64} {
  func.func @_xtx_linear_kernel(%arg0: i32, %arg1: memref<2xf32, #tpu.memory_space<smem>>, %arg2: memref<8x32xf32, #tpu.memory_space<vmem>>, %arg3: memref<32x32xf32, #tpu.memory_space<vmem>>, %arg4: memref<1x32xf32, #tpu.memory_space<vmem>>, %arg5: memref<32x32xf32, #tpu.memory_space<vmem>>, %arg6: memref<8x32xf32, #tpu.memory_space<vmem>>, %arg7: memref<32x32xf32, #tpu.memory_space<vmem>>) attributes {dimension_semantics = [#tpu.dimension_semantics<arbitrary>], iteration_bounds = array<i64: 2>, scalar_prefetch = 0 : i64, scratch_operands = 0 : i64, tpu.core_type = #tpu.core_type<tc>, window_params = [{transform_indices = @transform_0, window_bounds = array<i64: 2>}, {transform_indices = @transform_1, window_bounds = array<i64: 8, 32>}, {pipeline_mode = #tpu.pipeline_mode<synchronous>, transform_indices = @transform_2, window_bounds = array<i64: 32, 32>}, {pipeline_mode = #tpu.pipeline_mode<synchronous>, transform_indices = @transform_3, window_bounds = array<i64: 1, 32>}, {pipeline_mode = #tpu.pipeline_mode<synchronous>, transform_indices = @transform_4, window_bounds = array<i64: 32, 32>}, {transform_indices = @transform_5, window_bounds = array<i64: 8, 32>}, {pipeline_mode = #tpu.pipeline_mode<synchronous>, transform_indices = @transform_6, window_bounds = array<i64: 32, 32>}]} {
    %c0 = arith.constant 0 : index
    %c0_0 = arith.constant 0 : index
    %0 = vector.load %arg2[%c0, %c0_0] : memref<8x32xf32, #tpu.memory_space<vmem>>, vector<8x32xf32>
    %c0_1 = arith.constant 0 : index
    %c0_2 = arith.constant 0 : index
    %1 = vector.load %arg3[%c0_1, %c0_2] : memref<32x32xf32, #tpu.memory_space<vmem>>, vector<32x32xf32>
    %cst = arith.constant dense<0.000000e+00> : vector<8x32xf32>
    %2 = tpu.matmul %0, %1, %cst {dimension_numbers = #tpu.dot_dimension_numbers<[1], [0], [0], [1], [0, 0, 1, 1], [], []>} : vector<8x32xf32>, vector<32x32xf32>, vector<8x32xf32> -> vector<8x32xf32>
    %c0_3 = arith.constant 0 : index
    %c0_4 = arith.constant 0 : index
    %3 = vector.load %arg4[%c0_3, %c0_4] : memref<1x32xf32, #tpu.memory_space<vmem>>, vector<1x32xf32>
    %4 = vector.broadcast %3 : vector<1x32xf32> to vector<8x32xf32>
    %5 = arith.addf %2, %4 : vector<8x32xf32>
    %c0_5 = arith.constant 0 : index
    %c0_6 = arith.constant 0 : index
    %6 = vector.load %arg6[%c0_5, %c0_6] : memref<8x32xf32, #tpu.memory_space<vmem>>, vector<8x32xf32>
    tpu.vector_store %arg6[%c0_5, %c0_6], %5 {strides = array<i32>} : memref<8x32xf32, #tpu.memory_space<vmem>>, vector<8x32xf32>,
    %c0_i32 = arith.constant 0 : i32
    %7 = arith.cmpi eq, %arg0, %c0_i32 : i32
    %8 = arith.extui %7 : i1 to i32
    %c0_i32_7 = arith.constant 0 : i32
    %9 = arith.cmpi ne, %8, %c0_i32_7 : i32
    scf.if %9 {
      %cst_14 = arith.constant 0.000000e+00 : f32
      %17 = vector.broadcast %cst_14 : f32 to vector<32x32xf32>
      %c0_15 = arith.constant 0 : index
      %c0_16 = arith.constant 0 : index
      %18 = vector.load %arg7[%c0_15, %c0_16] : memref<32x32xf32, #tpu.memory_space<vmem>>, vector<32x32xf32>
      tpu.vector_store %arg7[%c0_15, %c0_16], %17 {strides = array<i32>} : memref<32x32xf32, #tpu.memory_space<vmem>>, vector<32x32xf32>,
    } else {
    }
    %c0_8 = arith.constant 0 : index
    %c0_9 = arith.constant 0 : index
    %10 = vector.load %arg7[%c0_8, %c0_9] : memref<32x32xf32, #tpu.memory_space<vmem>>, vector<32x32xf32>
    %cst_10 = arith.constant dense<0.000000e+00> : vector<32x32xf32>
    %11 = tpu.matmul %0, %0, %cst_10 {dimension_numbers = #tpu.dot_dimension_numbers<[0], [0], [1], [1], [0, 1, 1, 1], [], []>} : vector<8x32xf32>, vector<8x32xf32>, vector<32x32xf32> -> vector<32x32xf32>
    %12 = arith.addf %10, %11 : vector<32x32xf32>
    %c0_11 = arith.constant 0 : index
    %c0_12 = arith.constant 0 : index
    %13 = vector.load %arg7[%c0_11, %c0_12] : memref<32x32xf32, #tpu.memory_space<vmem>>, vector<32x32xf32>
    tpu.vector_store %arg7[%c0_11, %c0_12], %12 {strides = array<i32>} : memref<32x32xf32, #tpu.memory_space<vmem>>, vector<32x32xf32>,
    %c1_i32 = arith.constant 1 : i32
    %14 = arith.cmpi eq, %arg0, %c1_i32 : i32
    %15 = arith.extui %14 : i1 to i32
    %c0_i32_13 = arith.constant 0 : i32
    %16 = arith.cmpi ne, %15, %c0_i32_13 : i32
    scf.if %16 {
      %c0_14 = arith.constant 0 : index
      %17 = memref.load %arg1[%c0_14] : memref<2xf32, #tpu.memory_space<smem>>
      %c0_15 = arith.constant 0 : index
      %c0_16 = arith.constant 0 : index
      %18 = vector.load %arg5[%c0_15, %c0_16] : memref<32x32xf32, #tpu.memory_space<vmem>>, vector<32x32xf32>
      %19 = vector.broadcast %17 : f32 to vector<32x32xf32>
      %20 = arith.mulf %19, %18 : vector<32x32xf32>
      %c1 = arith.constant 1 : index
      %21 = memref.load %arg1[%c1] : memref<2xf32, #tpu.memory_space<smem>>
      %c0_17 = arith.constant 0 : index
      %c0_18 = arith.constant 0 : index
      %22 = vector.load %arg7[%c0_17, %c0_18] : memref<32x32xf32, #tpu.memory_space<vmem>>, vector<32x32xf32>
      %23 = vector.broadcast %21 : f32 to vector<32x32xf32>
      %24 = arith.mulf %23, %22 : vector<32x32xf32>
      %25 = arith.addf %20, %24 : vector<32x32xf32>
      %c0_19 = arith.constant 0 : index
      %c0_20 = arith.constant 0 : index
      %26 = vector.load %arg7[%c0_19, %c0_20] : memref<32x32xf32, #tpu.memory_space<vmem>>, vector<32x32xf32>
      tpu.vector_store %arg7[%c0_19, %c0_20], %25 {strides = array<i32>} : memref<32x32xf32, #tpu.memory_space<vmem>>, vector<32x32xf32>,
    } else {
    }
    return
  }
  func.func @transform_0(%arg0: i32) -> i32 {
    %c0_i32 = arith.constant 0 : i32
    %c0_i32_0 = arith.constant 0 : i32
    return %c0_i32 : i32
  }
  func.func @transform_1(%arg0: i32) -> (i32, i32) {
    %c0_i32 = arith.constant 0 : i32
    %c0_i32_0 = arith.constant 0 : i32
    return %arg0, %c0_i32 : i32, i32
  }
  func.func @transform_2(%arg0: i32) -> (i32, i32) {
    %c0_i32 = arith.constant 0 : i32
    %c0_i32_0 = arith.constant 0 : i32
    %c0_i32_1 = arith.constant 0 : i32
    return %c0_i32, %c0_i32_0 : i32, i32
  }
  func.func @transform_3(%arg0: i32) -> (i32, i32) {
    %c0_i32 = arith.constant 0 : i32
    %c0_i32_0 = arith.constant 0 : i32
    %c0_i32_1 = arith.constant 0 : i32
    return %c0_i32, %c0_i32_0 : i32, i32
  }
  func.func @transform_4(%arg0: i32) -> (i32, i32) {
    %c0_i32 = arith.constant 0 : i32
    %c0_i32_0 = arith.constant 0 : i32
    %c0_i32_1 = arith.constant 0 : i32
    return %c0_i32, %c0_i32_0 : i32, i32
  }
  func.func @transform_5(%arg0: i32) -> (i32, i32) {
    %c0_i32 = arith.constant 0 : i32
    %c0_i32_0 = arith.constant 0 : i32
    return %arg0, %c0_i32 : i32, i32
  }
  func.func @transform_6(%arg0: i32) -> (i32, i32) {
    %c0_i32 = arith.constant 0 : i32
    %c0_i32_0 = arith.constant 0 : i32
    %c0_i32_1 = arith.constant 0 : i32
    return %c0_i32, %c0_i32_0 : i32, i32
  }
}

</mosaic_0001>

<llo_original>
// kernel: _fused_forward.1
$region0: #{_fused_forward.1}
  #allocation0 [shape = 'u32[]', space=smem, size = 0x4, offset = 0x4, fixed_abs, tag = 'smem constant byte address 0x4 - core index']
  #allocation1 [shape = 'u32[144,128]{1,0:T(1,128)}', space=vmem, size = 0x12000, scoped, tag = 'internal scratch']
  %s0 = inlined_call_operand.vmem [shape: f32[2], index: 0, kind: input, shape index: {}]
  %s1 = inlined_call_operand.hbm [shape: f32[16,32], index: 1, kind: input, shape index: {}]
  %s2 = inlined_call_operand.hbm [shape: f32[32,32], index: 2, kind: input, shape index: {}]
  %s3 = inlined_call_operand.vmem [shape: f32[1,32], index: 3, kind: input, shape index: {}]
  %s4 = inlined_call_operand.hbm [shape: f32[32,32], index: 4, kind: input, shape index: {}, may-alias: {4,6}]
  %s5 = inlined_call_operand.hbm [shape: f32[16,32], index: 5, kind: output, shape index: {0}]
  %s6 = inlined_call_operand.hbm [shape: f32[32,32], index: 6, kind: output, shape index: {1}, may-alias: {4,6}]
  %7 = xla_tuple %s5, %s6
  %s8 = sld [smem:[#allocation0]]
  $region85: #{_fused_forward.1} parent=0
    _
  %s10 = ssub.s32 1, %s8
  %s11 = scalar_select 0, %s10, %s8
  $region1: #{_fused_forward.1} parent=0
    #allocation2 [shape = 'u8[512]{0}', space=smem, size = 0x200, scoped, tag = 'input window, operand 0, single buffered']
    #allocation3 [shape = 's32[2]{0}', space=sflag, size = 0x8, scoped, tag = 'scoped memory for _fused_forward.1']
    #allocation4 [shape = 's32[2]{0}', space=sflag, size = 0x8, scoped, tag = 'scoped memory for _fused_forward.1']
    #allocation5 [shape = 's32[2]{0}', space=sflag, size = 0x8, scoped, tag = 'scoped memory for _fused_forward.1']
    #allocation6 [shape = 'u8[8192]{0}', space=vmem, size = 0x2000, scoped, tag = 'input window, operand 1']
    #allocation7 [shape = 'u8[16384]{0}', space=vmem, size = 0x4000, scoped, tag = 'input window, operand 2, single buffered']
    #allocation8 [shape = 's32[1]{0}', space=sflag, size = 0x4, scoped, tag = 'scoped memory for _fused_forward.1']
    #allocation9 [shape = 'u8[16384]{0}', space=vmem, size = 0x4000, scoped, tag = 'input window, operand 4, single buffered']
    #allocation10 [shape = 'u8[8192]{0}', space=vmem, size = 0x2000, scoped, tag = 'output window, operand 0']
    #allocation11 [shape = 'u8[16384]{0}', space=vmem, size = 0x4000, scoped, tag = 'output window, operand 1, single buffered']
    #allocation12 [shape = 's32[1]{0}', space=sflag, size = 0x4, scoped, tag = 'scoped memory for _fused_forward.1']
    %12 = vsyncpa [#allocation5], 0
    %13 = vsyncpa [#allocation3], 0
    %s14 = scalar_lea.sflag [#allocation3], 1
    %15 = vsyncpa %s14, 0
    %16 = vsyncpa [#allocation8], 0
    %17 = vsyncpa [#allocation4], 0
    %s18 = scalar_lea.sflag [#allocation4], 1
    %19 = vsyncpa %s18, 0
    %20 = vsyncpa [#allocation12], 0
    loop: start=0, step=1, limit=4
    $region2: #{_fused_forward.1} parent=1 // loop_pre_header
      _
    $region3: #{_fused_forward.1} parent=1 // loop_header
      %s22 = sphi 0, %s26
      %p23 = scmp.ge.s32.totalorder %s22, 4
      %s30 = sphi 0, %s30
      %s32 = sphi 0, %s30
      %s33 = sphi 0, %s32
      %s47 = sphi 0, %s33
      %s53 = sphi 0, %s55
      %s56 = sphi 0, %s53
      %s57 = sphi 0, %s56
      %s73 = sphi 0, %s57
      %s77 = sphi 0, %s77
      %s79 = sphi 0, %s77
      %s80 = sphi 0, %s79
      %s94 = sphi 0, %s80
      %s98 = sphi 0, %s98
      %s100 = sphi 0, %s98
      %s101 = sphi 0, %s100
      %s115 = sphi 0, %s101
      %s119 = sphi 0, %s119
      %s121 = sphi 0, %s119
      %s122 = sphi 0, %s121
      %s136 = sphi 0, %s122
      %s142 = sphi 0, %s144
      %s145 = sphi 0, %s142
      %s146 = sphi 0, %s145
      %s162 = sphi 0, %s146
      %s166 = sphi 0, %s166
      %s168 = sphi 0, %s166
      %s169 = sphi 0, %s168
      %s183 = sphi 0, %s169
    $region4: #{_fused_forward.1} parent=1 // loop_header_branch
      %25 = sbr.rel (%p23) target = $region8
    $region5: #{_fused_forward.1} parent=1 // loop_body
      %s27 = ssub.s32 %s22, 1
      %s28 = ssub.s32 %s22, 2
      %s29 = sadd.s32 %s22, 1
      %s31 = sadd.s32 %s30, 1
      %p34 = scmp.eq.s32.totalorder %s22, 1
      %p35 = scmp.ne.s32.totalorder %s30, %s32
      %p36 = scmp.eq.s32.totalorder %s22, 0
      %p37 = por %p35, %p36
      %p38 = scmp.ne.s32.totalorder %s30, %s32
      %p39 = scmp.eq.s32.totalorder %s27, 1
      %p40 = por %p38, %p39
      %p41 = scmp.ne.s32.totalorder %s32, %s33
      %p42 = scmp.eq.s32.totalorder %s27, 0
      %p43 = por %p41, %p42
      %p44 = scmp.ne.s32.totalorder %s32, %s33
      %p45 = scmp.eq.s32.totalorder %s28, 1
      %p46 = por %p44, %p45
      %p48 = scmp.ne.s32.totalorder %s33, %s47
      %p49 = scmp.eq.s32.totalorder %s28, 0
      %p50 = por %p48, %p49
      %s51 = ssub.s32 %s22, %s29
      %p52 = scmp.eq.s32.totalorder %s51, 0
      %s54 = sadd.s32 %s53, 1
      %s55 = scalar_select %p52, %s53, %s54
      %p58 = pneg %p52
      %p59 = scmp.eq.s32.totalorder %s22, 1
      %p60 = por %p58, %p59
      %p61 = scmp.ne.s32.totalorder %s53, %s56
      %p62 = scmp.eq.s32.totalorder %s22, 0
      %p63 = por %p61, %p62
      %p64 = scmp.ne.s32.totalorder %s53, %s56
      %p65 = scmp.eq.s32.totalorder %s27, 1
      %p66 = por %p64, %p65
      %p67 = scmp.ne.s32.totalorder %s56, %s57
      %p68 = scmp.eq.s32.totalorder %s27, 0
      %p69 = por %p67, %p68
      %p70 = scmp.ne.s32.totalorder %s56, %s57
      %p71 = scmp.eq.s32.totalorder %s28, 1
      %p72 = por %p70, %p71
      %p74 = scmp.ne.s32.totalorder %s57, %s73
      %p75 = scmp.eq.s32.totalorder %s28, 0
      %p76 = por %p74, %p75
      %s78 = sadd.s32 %s77, 1
      %p81 = scmp.eq.s32.totalorder %s22, 1
      %p82 = scmp.ne.s32.totalorder %s77, %s79
      %p83 = scmp.eq.s32.totalorder %s22, 0
      %p84 = por %p82, %p83
      %p85 = scmp.ne.s32.totalorder %s77, %s79
      %p86 = scmp.eq.s32.totalorder %s27, 1
      %p87 = por %p85, %p86
      %p88 = scmp.ne.s32.totalorder %s79, %s80
      %p89 = scmp.eq.s32.totalorder %s27, 0
      %p90 = por %p88, %p89
      %p91 = scmp.ne.s32.totalorder %s79, %s80
      %p92 = scmp.eq.s32.totalorder %s28, 1
      %p93 = por %p91, %p92
      %p95 = scmp.ne.s32.totalorder %s80, %s94
      %p96 = scmp.eq.s32.totalorder %s28, 0
      %p97 = por %p95, %p96
      %s99 = sadd.s32 %s98, 1
      %p102 = scmp.eq.s32.totalorder %s22, 1
      %p103 = scmp.ne.s32.totalorder %s98, %s100
      %p104 = scmp.eq.s32.totalorder %s22, 0
      %p105 = por %p103, %p104
      %p106 = scmp.ne.s32.totalorder %s98, %s100
      %p107 = scmp.eq.s32.totalorder %s27, 1
      %p108 = por %p106, %p107
      %p109 = scmp.ne.s32.totalorder %s100, %s101
      %p110 = scmp.eq.s32.totalorder %s27, 0
      %p111 = por %p109, %p110
      %p112 = scmp.ne.s32.totalorder %s100, %s101
      %p113 = scmp.eq.s32.totalorder %s28, 1
      %p114 = por %p112, %p113
      %p116 = scmp.ne.s32.totalorder %s101, %s115
      %p117 = scmp.eq.s32.totalorder %s28, 0
      %p118 = por %p116, %p117
      %s120 = sadd.s32 %s119, 1
      %p123 = scmp.eq.s32.totalorder %s22, 1
      %p124 = scmp.ne.s32.totalorder %s119, %s121
      %p125 = scmp.eq.s32.totalorder %s22, 0
      %p126 = por %p124, %p125
      %p127 = scmp.ne.s32.totalorder %s119, %s121
      %p128 = scmp.eq.s32.totalorder %s27, 1
      %p129 = por %p127, %p128
      %p130 = scmp.ne.s32.totalorder %s121, %s122
      %p131 = scmp.eq.s32.totalorder %s27, 0
      %p132 = por %p130, %p131
      %p133 = scmp.ne.s32.totalorder %s121, %s122
      %p134 = scmp.eq.s32.totalorder %s28, 1
      %p135 = por %p133, %p134
      %p137 = scmp.ne.s32.totalorder %s122, %s136
      %p138 = scmp.eq.s32.totalorder %s28, 0
      %p139 = por %p137, %p138
      %s140 = ssub.s32 %s22, %s29
      %p141 = scmp.eq.s32.totalorder %s140, 0
      %s143 = sadd.s32 %s142, 1
      %s144 = scalar_select %p141, %s142, %s143
      %p147 = pneg %p141
      %p148 = scmp.eq.s32.totalorder %s22, 1
      %p149 = por %p147, %p148
      %p150 = scmp.ne.s32.totalorder %s142, %s145
      %p151 = scmp.eq.s32.totalorder %s22, 0
      %p152 = por %p150, %p151
      %p153 = scmp.ne.s32.totalorder %s142, %s145
      %p154 = scmp.eq.s32.totalorder %s27, 1
      %p155 = por %p153, %p154
      %p156 = scmp.ne.s32.totalorder %s145, %s146
      %p157 = scmp.eq.s32.totalorder %s27, 0
      %p158 = por %p156, %p157
      %p159 = scmp.ne.s32.totalorder %s145, %s146
      %p160 = scmp.eq.s32.totalorder %s28, 1
      %p161 = por %p159, %p160
      %p163 = scmp.ne.s32.totalorder %s146, %s162
      %p164 = scmp.eq.s32.totalorder %s28, 0
      %p165 = por %p163, %p164
      %s167 = sadd.s32 %s166, 1
      %p170 = scmp.eq.s32.totalorder %s22, 1
      %p171 = scmp.ne.s32.totalorder %s166, %s168
      %p172 = scmp.eq.s32.totalorder %s22, 0
      %p173 = por %p171, %p172
      %p174 = scmp.ne.s32.totalorder %s166, %s168
      %p175 = scmp.eq.s32.totalorder %s27, 1
      %p176 = por %p174, %p175
      %p177 = scmp.ne.s32.totalorder %s168, %s169
      %p178 = scmp.eq.s32.totalorder %s27, 0
      %p179 = por %p177, %p178
      %p180 = scmp.ne.s32.totalorder %s168, %s169
      %p181 = scmp.eq.s32.totalorder %s28, 1
      %p182 = por %p180, %p181
      %p184 = scmp.ne.s32.totalorder %s169, %s183
      %p185 = scmp.eq.s32.totalorder %s28, 0
      %p186 = por %p184, %p185
      %p187 = scmp.le.s32.totalorder 1, %s22
      %p188 = scmp.lt.s32.totalorder %s22, 3
      %p189 = pnand %p187, %p188
      %p190 = pneg %p189
      // Predicated region
      $region9: #{_fused_forward.1} parent=5 // pred_check
        _
      $region10: #{_fused_forward.1} parent=5 // pred_check_branch
        %192 = sbr.rel (%p189) target = $region12
      $region11: #{_fused_forward.1} parent=5 // pred_region
        %s193 = ssub.s32 %s22, 1
        // Predicated region
        $region13: #{_fused_forward.1} parent=11 // pred_check
          %p194 = pneg %p43
        $region14: #{_fused_forward.1} parent=11 // pred_check_branch
          %196 = sbr.rel (%p194) target = $region16
        $region15: #{_fused_forward.1} parent=11 // pred_region
          %s198 = ssub.s32 16, 16
          %199 = vsyncadd [#allocation5], %s198
          %s201 = sshll.u32 %s0, 4
          %s202 = int_to_ptr.vmem [resolvable:$true] %s201
          %204 = dma.vmem_to_smem %s202, 16, [#allocation2], [#allocation5]
        $region16: #{_fused_forward.1} parent=11 // pred_fallthru
          _
        // Predicated region
        $region17: #{_fused_forward.1} parent=11 // pred_check
          %p205 = pneg %p90
        $region18: #{_fused_forward.1} parent=11 // pred_check_branch
          %207 = sbr.rel (%p205) target = $region20
        $region19: #{_fused_forward.1} parent=11 // pred_region
          %s209 = ssub.s32 512, 512
          %210 = vsyncadd [#allocation8], %s209
          %s211 = sshll.u32 [#allocation7], 4
          %s212 = int_to_ptr.vmem [resolvable:$true] %s211
          %217 = dma.hbm_to_vmem [thread:$0]  %s2, 512, %s212, [#allocation8], 128, 128, 8
        $region20: #{_fused_forward.1} parent=11 // pred_fallthru
          _
        // Predicated region
        $region21: #{_fused_forward.1} parent=11 // pred_check
          %p218 = pneg %p111
        $region22: #{_fused_forward.1} parent=11 // pred_check_branch
          %220 = sbr.rel (%p218) target = $region24
        $region23: #{_fused_forward.1} parent=11 // pred_region
          _
        $region24: #{_fused_forward.1} parent=11 // pred_fallthru
          _
        // Predicated region
        $region25: #{_fused_forward.1} parent=11 // pred_check
          %p221 = pneg %p132
        $region26: #{_fused_forward.1} parent=11 // pred_check_branch
          %223 = sbr.rel (%p221) target = $region28
        $region27: #{_fused_forward.1} parent=11 // pred_region
          %s225 = ssub.s32 512, 512
          %226 = vsyncadd [#allocation8], %s225
          %s227 = sshll.u32 [#allocation9], 4
          %s228 = int_to_ptr.vmem [resolvable:$true] %s227
          %233 = dma.hbm_to_vmem [thread:$0]  %s4, 512, %s228, [#allocation8], 128, 128, 8
        $region28: #{_fused_forward.1} parent=11 // pred_fallthru
          _
      $region12: #{_fused_forward.1} parent=5 // pred_fallthru
        _
      %p234 = scmp.lt.s32.totalorder %s22, 2
      // Predicated region
      $region29: #{_fused_forward.1} parent=5 // pred_check
        %p235 = pneg %p234
      $region30: #{_fused_forward.1} parent=5 // pred_check_branch
        %237 = sbr.rel (%p235) target = $region32
      $region31: #{_fused_forward.1} parent=5 // pred_region
        // Predicated region
        $region33: #{_fused_forward.1} parent=31 // pred_check
          %p238 = pneg %p63
        $region34: #{_fused_forward.1} parent=31 // pred_check_branch
          %240 = sbr.rel (%p238) target = $region36
        $region35: #{_fused_forward.1} parent=31 // pred_region
          %s241 = sand.u32 %s53, 1
          %s242 = scalar_lea.sflag [#allocation3], %s241
          %s243 = sand.u32 %s53, 1
          %s244 = smul.addr %s243, 8
          %s245 = scalar_lea.vmem [#allocation6], %s244
          %s247 = ssub.s32 128, 128
          %248 = vsyncadd %s242, %s247
          %s249 = smul.addr %s22, 128
          %s250 = scalar_lea.hbm %s1, %s249
          %s252 = sshll.u32 %s245, 4
          %s253 = int_to_ptr.vmem [resolvable:$true] %s252
          %255 = dma.hbm_to_vmem [thread:$0]  %s250, 128, %s253, %s242
        $region36: #{_fused_forward.1} parent=31 // pred_fallthru
          _
      $region32: #{_fused_forward.1} parent=5 // pred_fallthru
        _
      %p256 = scmp.le.s32.totalorder 1, %s22
      %p257 = scmp.lt.s32.totalorder %s22, 3
      %p258 = pnand %p256, %p257
      %p259 = pneg %p258
      // Predicated region
      $region37: #{_fused_forward.1} parent=5 // pred_check
        _
      $region38: #{_fused_forward.1} parent=5 // pred_check_branch
        %261 = sbr.rel (%p258) target = $region40
      $region39: #{_fused_forward.1} parent=5 // pred_region
        %s262 = ssub.s32 %s22, 1
        // Predicated region
        $region41: #{_fused_forward.1} parent=39 // pred_check
          %p263 = pneg %p43
        $region42: #{_fused_forward.1} parent=39 // pred_check_branch
          %265 = sbr.rel (%p263) target = $region44
        $region43: #{_fused_forward.1} parent=39 // pred_region
          %266 = dma.done [#allocation5], 16
        $region44: #{_fused_forward.1} parent=39 // pred_fallthru
          _
        %s267 = sand.u32 %s56, 1
        %s268 = scalar_lea.sflag [#allocation3], %s267
        %s269 = sand.u32 %s56, 1
        %s270 = smul.addr %s269, 8
        %s271 = scalar_lea.vmem [#allocation6], %s270
        // Predicated region
        $region45: #{_fused_forward.1} parent=39 // pred_check
          %p272 = pneg %p69
        $region46: #{_fused_forward.1} parent=39 // pred_check_branch
          %274 = sbr.rel (%p272) target = $region48
        $region47: #{_fused_forward.1} parent=39 // pred_region
          %275 = dma.done %s268, 128
        $region48: #{_fused_forward.1} parent=39 // pred_fallthru
          _
        // Predicated region
        $region49: #{_fused_forward.1} parent=39 // pred_check
          %p276 = pneg %p90
        $region50: #{_fused_forward.1} parent=39 // pred_check_branch
          %278 = sbr.rel (%p276) target = $region52
        $region51: #{_fused_forward.1} parent=39 // pred_region
          %279 = dma.done [#allocation8], 512
        $region52: #{_fused_forward.1} parent=39 // pred_fallthru
          _
        // Predicated region
        $region53: #{_fused_forward.1} parent=39 // pred_check
          %p280 = pneg %p132
        $region54: #{_fused_forward.1} parent=39 // pred_check_branch
          %282 = sbr.rel (%p280) target = $region56
        $region55: #{_fused_forward.1} parent=39 // pred_region
          %283 = dma.done [#allocation8], 512
        $region56: #{_fused_forward.1} parent=39 // pred_fallthru
          _
        %284 = sfence
        %p285 = pneg %p43
        %p286 = pneg %p40
        %s287 = sand.u32 %s56, 1
        %s288 = scalar_lea.sflag [#allocation3], %s287
        %s289 = sand.u32 %s56, 1
        %s290 = smul.addr %s289, 8
        %s291 = scalar_lea.vmem [#allocation6], %s290
        %p292 = pneg %p69
        %p293 = pneg %p66
        %p294 = pneg %p90
        %p295 = pneg %p87
        %p296 = pneg %p111
        %p297 = pneg %p108
        %p298 = pneg %p132
        %p299 = pneg %p129
        %p300 = pneg %p158
        %p301 = pneg %p155
        %s302 = sand.u32 %s145, 1
        %s303 = scalar_lea.sflag [#allocation4], %s302
        %s304 = sand.u32 %s145, 1
        %s305 = smul.addr %s304, 8
        %s306 = scalar_lea.vmem [#allocation10], %s305
        %p307 = pneg %p179
        %p308 = pneg %p176
        %v309 = vld [vmem:[%s271] sm:$0xff]
        %v310 = vld [vmem:[#allocation7] sm:$0xff]
        %v311 = vld [vmem:[#allocation7 + $0x8] sm:$0xff]
        %v312 = vld [vmem:[#allocation7 + $0x10] sm:$0xff]
        %v313 = vld [vmem:[#allocation7 + $0x18] sm:$0xff]
        %v314 = vld [vmem:[%s3] sm:$0x1]
        %v316 = vlaneseq
        %v317 = vshrl.u32 %v316, 7
        %v318 = vsub.s32 0, %v317
        %v319 = vrot.slane %v314, %v318
        %vm321 = vcmask 261120
        %v323 = vsel %vm321, %v309, 0
        %325 = vmatprep.subr.mxu0 0.0
        %326 = vmatpush1.msra.mxu0 %v310
        %327 = vmatprep.subr.mxu0 0.0
        %328 = vmatpush1.msra.mxu0 %v311
        %329 = vmatprep.subr.mxu0 0.0
        %330 = vmatpush1.msra.mxu0 %v312
        %331 = vmatprep.subr.mxu0 0.0
        %332 = vmatpush1.msra.mxu0 %v313
        %333 = vmatprep.subr.mxu0 0.0
        %334 = vmatpush1.msra.mxu0 0.0
        %335 = vmatprep.subr.mxu0 0.0
        %336 = vmatpush1.msra.mxu0 0.0
        %337 = vmatprep.subr.mxu0 0.0
        %338 = vmatpush1.msra.mxu0 0.0
        %339 = vmatprep.subr.mxu0 0.0
        %340 = vmatpush1.msra.mxu0 0.0
        %341 = vmatprep.subr.mxu0 0.0
        %342 = vmatpush1.msra.mxu0 0.0
        %343 = vmatprep.subr.mxu0 0.0
        %344 = vmatpush1.msra.mxu0 0.0
        %345 = vmatprep.subr.mxu0 0.0
        %346 = vmatpush1.msra.mxu0 0.0
        %347 = vmatprep.subr.mxu0 0.0
        %348 = vmatpush1.msra.mxu0 0.0
        %349 = vmatprep.subr.mxu0 0.0
        %350 = vmatpush1.msra.mxu0 0.0
        %351 = vmatprep.subr.mxu0 0.0
        %352 = vmatpush1.msra.mxu0 0.0
        %353 = vmatprep.subr.mxu0 0.0
        %354 = vmatpush1.msra.mxu0 0.0
        %355 = vmatprep.subr.mxu0 0.0
        %356 = vmatpush1.msra.mxu0 0.0
        %357 = vmatprep.subr.mxu0 0.0
        %358 = vmatpush1.msra.mxu0 0.0
        %359 = vmatprep.subr.mxu0 0.0
        %360 = vmatpush1.msra.mxu0 0.0
        %361 = vmatprep.subr.mxu0 0.0
        %362 = vmatpush1.msra.mxu0 0.0
        %363 = vmatprep.subr.mxu0 0.0
        %364 = vmatpush1.msra.mxu0 0.0
        %365 = vmatprep.subr.mxu0 0.0
        %366 = vmatpush1.msra.mxu0 0.0
        %367 = vmatprep.subr.mxu0 0.0
        %368 = vmatpush1.msra.mxu0 0.0
        %369 = vmatprep.subr.mxu0 0.0
        %370 = vmatpush1.msra.mxu0 0.0
        %371 = vmatprep.subr.mxu0 0.0
        %372 = vmatpush1.msra.mxu0 0.0
        %373 = vmatprep.subr.mxu0 0.0
        %374 = vmatpush1.msra.mxu0 0.0
        %375 = vmatprep.subr.mxu0 0.0
        %376 = vmatpush1.msra.mxu0 0.0
        %377 = vmatprep.subr.mxu0 0.0
        %378 = vmatpush1.msra.mxu0 0.0
        %379 = vmatprep.subr.mxu0 0.0
        %380 = vmatpush1.msra.mxu0 0.0
        %381 = vmatprep.subr.mxu0 0.0
        %382 = vmatpush1.msra.mxu0 0.0
        %383 = vmatprep.subr.mxu0 0.0
        %384 = vmatpush1.msra.mxu0 0.0
        %385 = vmatprep.subr.mxu0 0.0
        %386 = vmatpush1.msra.mxu0 0.0
        %387 = vmatprep.subr.mxu0 0.0
        %388 = vmatpush1.msra.mxu0 0.0
        %389 = vmatprep.mubr.f32.mxu0 0.0
        %390 = vmatmul.mubr.f32.gmra.mrb[0].mxu0 %v323
        %v391 = vpop.f32.mrb[0].mxu0
        %v392 = vadd.f32 %v319, %v391
        %v393 = vpop.f32.mrb[0].mxu0
        %394 = vdwg.mxu0
        %395 = vst.msk [vmem:[%s306] sm:$0xff] %vm321, %v392
        %p396 = scmp.eq.s32.totalorder %s27, 0
        // Predicated region
        $region57: #{_fused_forward.1} parent=39 // pred_check
          %p397 = pneg %p396
        $region58: #{_fused_forward.1} parent=39 // pred_check_branch
          %399 = sbr.rel (%p397) target = $region60
        $region59: #{_fused_forward.1} parent=39 // pred_region
          %400 = vst.msk [vmem:[#allocation11] sm:$0xff] %vm321, 0.0
          %401 = vst.msk [vmem:[#allocation11 + $0x8] sm:$0xff] %vm321, 0.0
          %402 = vst.msk [vmem:[#allocation11 + $0x10] sm:$0xff] %vm321, 0.0
          %403 = vst.msk [vmem:[#allocation11 + $0x18] sm:$0xff] %vm321, 0.0
        $region60: #{_fused_forward.1} parent=39 // pred_fallthru
          _
        %v404 = vld [vmem:[#allocation11] sm:$0xff]
        %v405 = vld [vmem:[#allocation11 + $0x8] sm:$0xff]
        %v406 = vld [vmem:[#allocation11 + $0x10] sm:$0xff]
        %v407 = vld [vmem:[#allocation11 + $0x18] sm:$0xff]
        %408 = vxpose.xlu0.b32.start [1/16] %v309, 128
        %409 = vxpose.xlu0.b32.cont [2/16] 0.0, 128
        %410 = vxpose.xlu0.b32.cont [3/16] 0.0, 128
        %411 = vxpose.xlu0.b32.cont [4/16] 0.0, 128
        %412 = vxpose.xlu0.b32.cont [5/16] 0.0, 128
        %413 = vxpose.xlu0.b32.cont [6/16] 0.0, 128
        %414 = vxpose.xlu0.b32.cont [7/16] 0.0, 128
        %415 = vxpose.xlu0.b32.cont [8/16] 0.0, 128
        %416 = vxpose.xlu0.b32.cont [9/16] 0.0, 128
        %417 = vxpose.xlu0.b32.cont [10/16] 0.0, 128
        %418 = vxpose.xlu0.b32.cont [11/16] 0.0, 128
        %419 = vxpose.xlu0.b32.cont [12/16] 0.0, 128
        %420 = vxpose.xlu0.b32.cont [13/16] 0.0, 128
        %421 = vxpose.xlu0.b32.cont [14/16] 0.0, 128
        %422 = vxpose.xlu0.b32.cont [15/16] 0.0, 128
        %423 = vxpose.xlu0.b32.end [16/16] 0.0, 128
        %v424 = vpop.trf.xlu0
        %v425 = vpop.trf.xlu0
        %v426 = vpop.trf.xlu0
        %v427 = vpop.trf.xlu0
        %v428 = vpop.trf.xlu0
        %v429 = vpop.trf.xlu0
        %v430 = vpop.trf.xlu0
        %v431 = vpop.trf.xlu0
        %v432 = vpop.trf.xlu0
        %v433 = vpop.trf.xlu0
        %v434 = vpop.trf.xlu0
        %v435 = vpop.trf.xlu0
        %v436 = vpop.trf.xlu0
        %v437 = vpop.trf.xlu0
        %v438 = vpop.trf.xlu0
        %v439 = vpop.trf.xlu0
        %vm440 = vcmask 64512
        %v442 = vsel %vm440, %v424, 0
        %v445 = vsel %vm440, %v425, 0
        %v448 = vsel %vm440, %v426, 0
        %v451 = vsel %vm440, %v427, 0
        %453 = vmatprep.subr.mxu0 0.0
        %454 = vmatpush1.msra.mxu0 %v309
        %455 = vmatprep.subr.mxu0 0.0
        %456 = vmatpush1.msra.mxu0 0.0
        %457 = vmatprep.subr.mxu0 0.0
        %458 = vmatpush1.msra.mxu0 0.0
        %459 = vmatprep.subr.mxu0 0.0
        %460 = vmatpush1.msra.mxu0 0.0
        %461 = vmatprep.subr.mxu0 0.0
        %462 = vmatpush1.msra.mxu0 0.0
        %463 = vmatprep.subr.mxu0 0.0
        %464 = vmatpush1.msra.mxu0 0.0
        %465 = vmatprep.subr.mxu0 0.0
        %466 = vmatpush1.msra.mxu0 0.0
        %467 = vmatprep.subr.mxu0 0.0
        %468 = vmatpush1.msra.mxu0 0.0
        %469 = vmatprep.subr.mxu0 0.0
        %470 = vmatpush1.msra.mxu0 0.0
        %471 = vmatprep.subr.mxu0 0.0
        %472 = vmatpush1.msra.mxu0 0.0
        %473 = vmatprep.subr.mxu0 0.0
        %474 = vmatpush1.msra.mxu0 0.0
        %475 = vmatprep.subr.mxu0 0.0
        %476 = vmatpush1.msra.mxu0 0.0
        %477 = vmatprep.subr.mxu0 0.0
        %478 = vmatpush1.msra.mxu0 0.0
        %479 = vmatprep.subr.mxu0 0.0
        %480 = vmatpush1.msra.mxu0 0.0
        %481 = vmatprep.subr.mxu0 0.0
        %482 = vmatpush1.msra.mxu0 0.0
        %483 = vmatprep.subr.mxu0 0.0
        %484 = vmatpush1.msra.mxu0 0.0
        %485 = vmatprep.subr.mxu0 0.0
        %486 = vmatpush1.msra.mxu0 0.0
        %487 = vmatprep.subr.mxu0 0.0
        %488 = vmatpush1.msra.mxu0 0.0
        %489 = vmatprep.subr.mxu0 0.0
        %490 = vmatpush1.msra.mxu0 0.0
        %491 = vmatprep.subr.mxu0 0.0
        %492 = vmatpush1.msra.mxu0 0.0
        %493 = vmatprep.subr.mxu0 0.0
        %494 = vmatpush1.msra.mxu0 0.0
        %495 = vmatprep.subr.mxu0 0.0
        %496 = vmatpush1.msra.mxu0 0.0
        %497 = vmatprep.subr.mxu0 0.0
        %498 = vmatpush1.msra.mxu0 0.0
        %499 = vmatprep.subr.mxu0 0.0
        %500 = vmatpush1.msra.mxu0 0.0
        %501 = vmatprep.subr.mxu0 0.0
        %502 = vmatpush1.msra.mxu0 0.0
        %503 = vmatprep.subr.mxu0 0.0
        %504 = vmatpush1.msra.mxu0 0.0
        %505 = vmatprep.subr.mxu0 0.0
        %506 = vmatpush1.msra.mxu0 0.0
        %507 = vmatprep.subr.mxu0 0.0
        %508 = vmatpush1.msra.mxu0 0.0
        %509 = vmatprep.subr.mxu0 0.0
        %510 = vmatpush1.msra.mxu0 0.0
        %511 = vmatprep.subr.mxu0 0.0
        %512 = vmatpush1.msra.mxu0 0.0
        %513 = vmatprep.subr.mxu0 0.0
        %514 = vmatpush1.msra.mxu0 0.0
        %515 = vmatprep.subr.mxu0 0.0
        %516 = vmatpush1.msra.mxu0 0.0
        %517 = vmatprep.mubr.f32.mxu0 0.0
        %518 = vmatmul.mubr.f32.gmra.mrb[0].mxu0 %v442
        %v519 = vpop.f32.mrb[0].mxu0
        %v520 = vadd.f32 0.0, %v519
        %v521 = vpop.f32.mrb[0].mxu0
        %522 = vmatprep.mubr.f32.mxu0 0.0
        %523 = vmatmul.mubr.f32.gmra.mrb[0].mxu0 %v445
        %v524 = vpop.f32.mrb[0].mxu0
        %v525 = vadd.f32 0.0, %v524
        %v526 = vpop.f32.mrb[0].mxu0
        %527 = vmatprep.mubr.f32.mxu0 0.0
        %528 = vmatmul.mubr.f32.gmra.mrb[0].mxu0 %v448
        %v529 = vpop.f32.mrb[0].mxu0
        %v530 = vadd.f32 0.0, %v529
        %v531 = vpop.f32.mrb[0].mxu0
        %532 = vmatprep.mubr.f32.mxu0 0.0
        %533 = vmatmul.mubr.f32.gmra.mrb[0].mxu0 %v451
        %v534 = vpop.f32.mrb[0].mxu0
        %v535 = vadd.f32 0.0, %v534
        %v536 = vpop.f32.mrb[0].mxu0
        %537 = vdwg.mxu0
        %v538 = vadd.f32 %v404, %v520
        %v539 = vadd.f32 %v405, %v525
        %v540 = vadd.f32 %v406, %v530
        %v541 = vadd.f32 %v407, %v535
        %542 = vst.msk [vmem:[#allocation11] sm:$0xff] %vm321, %v538
        %543 = vst.msk [vmem:[#allocation11 + $0x8] sm:$0xff] %vm321, %v539
        %544 = vst.msk [vmem:[#allocation11 + $0x10] sm:$0xff] %vm321, %v540
        %545 = vst.msk [vmem:[#allocation11 + $0x18] sm:$0xff] %vm321, %v541
        %p546 = scmp.eq.s32.totalorder %s27, 1
        // Predicated region
        $region61: #{_fused_forward.1} parent=39 // pred_check
          %p547 = pneg %p546
        $region62: #{_fused_forward.1} parent=39 // pred_check_branch
          %549 = sbr.rel (%p547) target = $region64
        $region63: #{_fused_forward.1} parent=39 // pred_region
          %s550 = sld [smem:[#allocation2]]
          %v551 = vld [vmem:[#allocation9] sm:$0xff]
          %v552 = vld [vmem:[#allocation9 + $0x8] sm:$0xff]
          %v553 = vld [vmem:[#allocation9 + $0x10] sm:$0xff]
          %v554 = vld [vmem:[#allocation9 + $0x18] sm:$0xff]
          %v555 = vstv %s550
          %v556 = vmul.f32 %v555, %v551
          %v557 = vmul.f32 %v555, %v552
          %v558 = vmul.f32 %v555, %v553
          %v559 = vmul.f32 %v555, %v554
          %s560 = sld [smem:[#allocation2 + $0x1]]
          %v561 = vld [vmem:[#allocation11] sm:$0xff]
          %v562 = vld [vmem:[#allocation11 + $0x8] sm:$0xff]
          %v563 = vld [vmem:[#allocation11 + $0x10] sm:$0xff]
          %v564 = vld [vmem:[#allocation11 + $0x18] sm:$0xff]
          %v565 = vstv %s560
          %v566 = vmul.f32 %v565, %v561
          %v567 = vmul.f32 %v565, %v562
          %v568 = vmul.f32 %v565, %v563
          %v569 = vmul.f32 %v565, %v564
          %v570 = vadd.f32 %v556, %v566
          %v571 = vadd.f32 %v557, %v567
          %v572 = vadd.f32 %v558, %v568
          %v573 = vadd.f32 %v559, %v569
          %574 = vst.msk [vmem:[#allocation11] sm:$0xff] %vm321, %v570
          %575 = vst.msk [vmem:[#allocation11 + $0x8] sm:$0xff] %vm321, %v571
          %576 = vst.msk [vmem:[#allocation11 + $0x10] sm:$0xff] %vm321, %v572
          %577 = vst.msk [vmem:[#allocation11 + $0x18] sm:$0xff] %vm321, %v573
        $region64: #{_fused_forward.1} parent=39 // pred_fallthru
          _
        %s578 = sand.u32 %s145, 1
        %s579 = scalar_lea.sflag [#allocation4], %s578
        %s580 = sand.u32 %s145, 1
        %s581 = smul.addr %s580, 8
        %s582 = scalar_lea.vmem [#allocation10], %s581
        // Predicated region
        $region65: #{_fused_forward.1} parent=39 // pred_check
          %p583 = pneg %p155
        $region66: #{_fused_forward.1} parent=39 // pred_check_branch
          %585 = sbr.rel (%p583) target = $region68
        $region67: #{_fused_forward.1} parent=39 // pred_region
          %s587 = ssub.s32 128, 128
          %588 = vsyncadd %s579, %s587
          %s589 = smul.addr %s27, 128
          %s590 = scalar_lea.hbm %s5, %s589
          %s592 = sshll.u32 %s582, 4
          %s593 = int_to_ptr.vmem [resolvable:$true] %s592
          %595 = dma.vmem_to_hbm [thread:$0]  %s593, 128, %s590, %s579
        $region68: #{_fused_forward.1} parent=39 // pred_fallthru
          _
        // Predicated region
        $region69: #{_fused_forward.1} parent=39 // pred_check
          %p596 = pneg %p176
        $region70: #{_fused_forward.1} parent=39 // pred_check_branch
          %598 = sbr.rel (%p596) target = $region72
        $region71: #{_fused_forward.1} parent=39 // pred_region
          %s600 = ssub.s32 512, 512
          %601 = vsyncadd [#allocation12], %s600
          %s602 = sshll.u32 [#allocation11], 4
          %s603 = int_to_ptr.vmem [resolvable:$true] %s602
          %608 = dma.vmem_to_hbm [thread:$0]  %s603, 512, %s6, [#allocation12], 128, 128, 8
        $region72: #{_fused_forward.1} parent=39 // pred_fallthru
          _
        // Predicated region
        $region73: #{_fused_forward.1} parent=39 // pred_check
          %p609 = pneg %p176
        $region74: #{_fused_forward.1} parent=39 // pred_check_branch
          %611 = sbr.rel (%p609) target = $region76
        $region75: #{_fused_forward.1} parent=39 // pred_region
          %612 = dma.done [#allocation12], 512
        $region76: #{_fused_forward.1} parent=39 // pred_fallthru
          _
      $region40: #{_fused_forward.1} parent=5 // pred_fallthru
        _
      %p613 = scmp.le.s32.totalorder 2, %s22
      // Predicated region
      $region77: #{_fused_forward.1} parent=5 // pred_check
        %p614 = pneg %p613
      $region78: #{_fused_forward.1} parent=5 // pred_check_branch
        %616 = sbr.rel (%p614) target = $region80
      $region79: #{_fused_forward.1} parent=5 // pred_region
        %s617 = ssub.s32 %s22, 2
        // Predicated region
        $region81: #{_fused_forward.1} parent=79 // pred_check
          %p618 = pneg %p161
        $region82: #{_fused_forward.1} parent=79 // pred_check_branch
          %620 = sbr.rel (%p618) target = $region84
        $region83: #{_fused_forward.1} parent=79 // pred_region
          %s621 = sand.u32 %s146, 1
          %s622 = scalar_lea.sflag [#allocation4], %s621
          %s623 = sand.u32 %s146, 1
          %s624 = smul.addr %s623, 8
          %s625 = scalar_lea.vmem [#allocation10], %s624
          %626 = dma.done %s622, 128
        $region84: #{_fused_forward.1} parent=79 // pred_fallthru
          _
      $region80: #{_fused_forward.1} parent=5 // pred_fallthru
        _
    $region6: #{_fused_forward.1} parent=1 // loop_footer
      %s26 = sadd.s32 1, %s22
    $region7: #{_fused_forward.1} parent=1 // loop_footer_branch
      %21 = sbr.rel target = $region3
    $region8: #{_fused_forward.1} parent=1 // loop_exit
      _
    %627 = vsyncpa [#allocation3], 1
    %s628 = scalar_lea.sflag [#allocation3], 1
    %629 = vsyncpa %s628, 1
    %630 = vsyncpa [#allocation8], 1
    %631 = vsyncpa [#allocation4], 1
    %s632 = scalar_lea.sflag [#allocation4], 1
    %633 = vsyncpa %s632, 1
    %634 = vsyncpa [#allocation12], 1
    %635 = vsyncpa [#allocation5], 1
    %s636 = scalar_lea.sflag [#allocation5], 1
    %637 = vsyncpa %s636, 1

</llo_original>
